<compile_context>
chip_gen: v7x
topology: tpu7x:2x2x1
jax: 0.10.0
libtpu: 0.0.40
codegen_flags: <defaults>
</compile_context>

<pallas_src>
import numpy as np

import jax
import jax.numpy as jnp
from jax import lax
from jax.experimental import pallas as pl
from jax.experimental.pallas import tpu as pltpu


def _make_const_rows(t: int, f: int, lanes: int, alpha: float) -> np.ndarray:
    """Row 0: alpha * linspace init on the t==0 lanes (else 0).
    Rows 1..: scan coefficients alpha^d for lanes >= d*2F (else 0)."""
    two_f = 2 * f
    lane = np.arange(lanes)
    freq = (lane % two_f) // 2
    step = (0.0001 - 0.001) / max(f - 1, 1)
    s0 = 0.001 + freq * step                  # linspace(0.001, 0.0001, f) per lane
    rows = [np.where(lane < two_f, alpha * s0, 0.0)]
    d = 1
    while d < t:
        rows.append(np.where(lane >= d * two_f, alpha ** d, 0.0))
        d *= 2
    return np.stack(rows).astype(np.float32)


def _make_kernel(t: int, f: int, lanes: int, alpha: float, eps: float):
    two_f = 2 * f
    one_minus_alpha = 1.0 - alpha

    def kernel(const_ref, x_ref, o_ref):
        # Upcast once: all intermediates in f32 (bf16 inputs stay accurate).
        x = x_ref[...].astype(jnp.float32)                 # (P, L)
        x2 = x * x

        # |x|^2 of each (time, freq) complex pair, replicated onto both of its
        # interleaved real/imag lanes: x2 + adjacent-lane-swapped x2.
        # The swap is two circular XLU rolls + one select (no concat copies).
        lane = lax.broadcasted_iota(jnp.int32, x2.shape, x2.ndim - 1)
        is_real = (lane & 1) == 0
        swapped = jnp.where(is_real,
                            pltpu.roll(x2, lanes - 1, axis=1),   # x2[l + 1]
                            pltpu.roll(x2, 1, axis=1))           # x2[l - 1]
        x_abs = jnp.sqrt(jnp.maximum(x2 + swapped, eps))

        # b_t = (1-alpha)*x_abs_t, with alpha*state_{-1} (the linspace init)
        # pre-baked into const row 0 (non-zero only on the t == 0 lanes).
        y = one_minus_alpha * x_abs + const_ref[0:1, :]

        # Inclusive first-order recurrence over time as a Hillis-Steele scan:
        #   state_t = sum_{j<=t} alpha^(t-j) * b_j
        # Each step: one circular roll by d*2F lanes + FMA with a precomputed
        # coefficient row (alpha^d above lane d*2F, 0 below -- the zeros also
        # cancel the circular wrap-around).
        d, j = 1, 1
        while d < t:
            y = y + pltpu.roll(y, d * two_f, axis=1) * const_ref[j:j + 1, :]
            d *= 2
            j += 1

        # TODO(synk): for large T (>= ~32) the scan could instead be one MXU
        # matmul against a resident LxL banded alpha-power matrix.
        o_ref[...] = (x * lax.rsqrt(y)).astype(o_ref.dtype)

    return kernel


def _choose_planes_per_block(num_planes: int, lanes: int, itemsize: int):
    """Returns (planes_per_block, grid_steps, vmem_limit_bytes)."""
    try:
        vmem_cap = int(pltpu.get_tpu_info().vmem_capacity_bytes)
    except Exception:
        vmem_cap = 64 << 20                        # conservative fallback
    if vmem_cap >= (100 << 20):                    # v5e / v6e: 128 MiB physical VMEM
        budget, vmem_limit = 80 << 20, 112 << 20
    else:                                          # v7x: 64 MiB physical VMEM
        budget, vmem_limit = 36 << 20, 52 << 20

    sub = max(8, 32 // itemsize)                   # full sublanes: 8 f32 / 16 bf16
    # Per-plane VMEM: in + out double-buffered + ~4 live f32 temporaries.
    per_plane = lanes * (4 * itemsize + 4 * 4)
    max_p = max(sub, (budget // per_plane) // sub * sub)

    padded = -(-num_planes // sub) * sub           # pad batch to full sublanes
    p = min(max_p, padded)

    # Megacore (v7x): split into >= 2 grid steps only when each block still
    # moves a meaningful amount of data; tiny problems stay as one step.
    if padded <= p:
        half = -(-((padded + 1) // 2) // sub) * sub
        if sub <= half < padded and half * lanes * itemsize >= (1 << 20):
            p = half

    padded = -(-padded // p) * p
    return p, padded // p, vmem_limit


def exponential_unit_norm(x: jnp.ndarray, alpha: float, eps: float = 1e-14):
    """x: (b, c, t, f, 2) interleaved real/imag. Returns the same shape/dtype."""
    b, c, t, f, two = x.shape
    assert two == 2
    bc = b * c
    plane_len = t * 2 * f                          # contiguous tail of one plane
    lanes = -(-plane_len // 128) * 128             # lane-dense (unmasked) stores

    itemsize = jnp.dtype(x.dtype).itemsize
    p, grid_steps, vmem_limit = _choose_planes_per_block(bc, lanes, itemsize)
    planes_padded = p * grid_steps

    xg = x.reshape(bc, plane_len)                  # free reshape (contiguous tail)
    if planes_padded != bc or lanes != plane_len:
        xg = jnp.pad(xg, ((0, planes_padded - bc), (0, lanes - plane_len)))
    xg = xg.reshape(grid_steps, p, lanes)

    const = jnp.asarray(_make_const_rows(t, f, lanes, alpha))
    kernel = _make_kernel(t, f, lanes, alpha, eps)

    y = pl.pallas_call(
        kernel,
        out_shape=jax.ShapeDtypeStruct((grid_steps, p, lanes), x.dtype),
        grid=(grid_steps,),
        in_specs=[
            # Tiny constant table: same block every step, stays resident.
            pl.BlockSpec((const.shape[0], lanes), lambda i: (0, 0)),
            pl.BlockSpec((pl.Squeezed(), p, lanes), lambda i: (i, 0, 0)),
        ],
        out_specs=pl.BlockSpec((pl.Squeezed(), p, lanes), lambda i: (i, 0, 0)),
        compiler_params=pltpu.CompilerParams(
            dimension_semantics=("parallel",),
            vmem_limit_bytes=vmem_limit,
        ),
    )(const, xg)

    y = y.reshape(planes_padded, lanes)
    if planes_padded != bc or lanes != plane_len:
        y = y[:bc, :plane_len]
    return y.reshape(b, c, t, f, 2)


def _reference(x, alpha, eps=1e-14):
    b, c, t, f, _ = x.shape
    x_abs = jnp.sqrt(jnp.maximum(jnp.sum(x * x, axis=-1, keepdims=True), eps))
    init = jnp.linspace(0.001, 0.0001, f, dtype=jnp.float32).reshape(1, 1, f, 1)
    state = jnp.broadcast_to(init, (b, c, f, 1))
    outs = []
    for ti in range(t):
        state = x_abs[:, :, ti] * (1 - alpha) + state * alpha
        outs.append(state)
    denom = jnp.sqrt(jnp.stack(outs, axis=2))
    return x / denom


if __name__ == "__main__":
    alpha = 0.8
    b, c, t, f = 2, 4, 8, 16

    key = jax.random.PRNGKey(0)
    x = jax.random.normal(key, (b, c, t, f, 2), dtype=jnp.float32)

    y = jax.block_until_ready(exponential_unit_norm(x, alpha))

    y_ref = _reference(x, alpha)
    assert y.shape == x.shape
    assert jnp.allclose(y, y_ref, rtol=1e-5, atol=1e-5), "mismatch vs reference"

    print("KERNEL_OK")
</pallas_src>

<mosaic_0001>
module attributes {stable_mosaic.version = 11 : i64} {
  func.func @kernel(%arg0: i32, %arg1: memref<4x256xf32, #tpu.memory_space<vmem>>, %arg2: memref<1x8x256xf32, #tpu.memory_space<vmem>>, %arg3: memref<1x8x256xf32, #tpu.memory_space<vmem>>) attributes {dimension_semantics = [#tpu.dimension_semantics<parallel>], iteration_bounds = array<i64: 1>, scalar_prefetch = 0 : i64, scratch_operands = 0 : i64, tpu.core_type = #tpu.core_type<tc>, window_params = [{pipeline_mode = #tpu.pipeline_mode<synchronous>, transform_indices = @transform_0, window_bounds = array<i64: 4, 256>}, {transform_indices = @transform_1, window_bounds = array<i64: 1, 8, 256>}, {transform_indices = @transform_2, window_bounds = array<i64: 1, 8, 256>}]} {
    %c0 = arith.constant 0 : index
    %c0_0 = arith.constant 0 : index
    %c0_1 = arith.constant 0 : index
    %0 = vector.load %arg2[%c0, %c0_0, %c0_1] : memref<1x8x256xf32, #tpu.memory_space<vmem>>, vector<1x8x256xf32>
    %1 = vector.shape_cast %0 : vector<1x8x256xf32> to vector<8x256xf32>
    %2 = arith.mulf %1, %1 : vector<8x256xf32>
    %3 = tpu.iota {dimensions = array<i32: 1>} : vector<8x256xi32>
    %c1_i32 = arith.constant 1 : i32
    %4 = vector.broadcast %c1_i32 : i32 to vector<8x256xi32>
    %5 = arith.andi %3, %4 : vector<8x256xi32>
    %c0_i32 = arith.constant 0 : i32
    %6 = vector.broadcast %c0_i32 : i32 to vector<8x256xi32>
    %7 = arith.cmpi eq, %5, %6 : vector<8x256xi32>
    %c255_i32 = arith.constant 255 : i32
    %8 = tpu.dynamic_rotate %2 by %c255_i32 dim 1 : vector<8x256xf32>, i32 -> vector<8x256xf32>
    %c1_i32_2 = arith.constant 1 : i32
    %9 = tpu.dynamic_rotate %2 by %c1_i32_2 dim 1 : vector<8x256xf32>, i32 -> vector<8x256xf32>
    %10 = arith.select %7, %8, %9 : vector<8x256xi1>, vector<8x256xf32>
    %11 = arith.addf %2, %10 : vector<8x256xf32>
    %cst = arith.constant 9.99999982E-15 : f32
    %12 = vector.broadcast %cst : f32 to vector<8x256xf32>
    %13 = arith.maximumf %11, %12 : vector<8x256xf32>
    %14 = math.sqrt %13 : vector<8x256xf32>
    %cst_3 = arith.constant 2.000000e-01 : f32
    %15 = vector.broadcast %cst_3 : f32 to vector<8x256xf32>
    %16 = arith.mulf %15, %14 : vector<8x256xf32>
    %c0_4 = arith.constant 0 : index
    %c0_5 = arith.constant 0 : index
    %17 = vector.load %arg1[%c0_4, %c0_5] : memref<4x256xf32, #tpu.memory_space<vmem>>, vector<1x256xf32>
    %18 = vector.broadcast %17 : vector<1x256xf32> to vector<8x256xf32>
    %19 = arith.addf %16, %18 : vector<8x256xf32>
    %c32_i32 = arith.constant 32 : i32
    %20 = tpu.dynamic_rotate %19 by %c32_i32 dim 1 : vector<8x256xf32>, i32 -> vector<8x256xf32>
    %c1 = arith.constant 1 : index
    %c0_6 = arith.constant 0 : index
    %21 = vector.load %arg1[%c1, %c0_6] : memref<4x256xf32, #tpu.memory_space<vmem>>, vector<1x256xf32>
    %22 = vector.broadcast %21 : vector<1x256xf32> to vector<8x256xf32>
    %23 = arith.mulf %20, %22 : vector<8x256xf32>
    %24 = arith.addf %19, %23 : vector<8x256xf32>
    %c64_i32 = arith.constant 64 : i32
    %25 = tpu.dynamic_rotate %24 by %c64_i32 dim 1 : vector<8x256xf32>, i32 -> vector<8x256xf32>
    %c2 = arith.constant 2 : index
    %c0_7 = arith.constant 0 : index
    %26 = vector.load %arg1[%c2, %c0_7] : memref<4x256xf32, #tpu.memory_space<vmem>>, vector<1x256xf32>
    %27 = vector.broadcast %26 : vector<1x256xf32> to vector<8x256xf32>
    %28 = arith.mulf %25, %27 : vector<8x256xf32>
    %29 = arith.addf %24, %28 : vector<8x256xf32>
    %c128_i32 = arith.constant 128 : i32
    %30 = tpu.dynamic_rotate %29 by %c128_i32 dim 1 : vector<8x256xf32>, i32 -> vector<8x256xf32>
    %c3 = arith.constant 3 : index
    %c0_8 = arith.constant 0 : index
    %31 = vector.load %arg1[%c3, %c0_8] : memref<4x256xf32, #tpu.memory_space<vmem>>, vector<1x256xf32>
    %32 = vector.broadcast %31 : vector<1x256xf32> to vector<8x256xf32>
    %33 = arith.mulf %30, %32 : vector<8x256xf32>
    %34 = arith.addf %29, %33 : vector<8x256xf32>
    %35 = math.rsqrt %34 : vector<8x256xf32>
    %36 = arith.mulf %1, %35 : vector<8x256xf32>
    %c0_9 = arith.constant 0 : index
    %c0_10 = arith.constant 0 : index
    %c0_11 = arith.constant 0 : index
    %37 = vector.load %arg3[%c0_9, %c0_10, %c0_11] : memref<1x8x256xf32, #tpu.memory_space<vmem>>, vector<1x8x256xf32>
    %38 = vector.shape_cast %37 : vector<1x8x256xf32> to vector<8x256xf32>
    %39 = vector.shape_cast %36 : vector<8x256xf32> to vector<1x8x256xf32>
    tpu.vector_store %arg3[%c0_9, %c0_10, %c0_11], %39 {strides = array<i32>} : memref<1x8x256xf32, #tpu.memory_space<vmem>>, vector<1x8x256xf32>,
    return
  }
  func.func @transform_0(%arg0: i32) -> (i32, i32) {
    %c0_i32 = arith.constant 0 : i32
    %c0_i32_0 = arith.constant 0 : i32
    %c0_i32_1 = arith.constant 0 : i32
    return %c0_i32, %c0_i32_0 : i32, i32
  }
  func.func @transform_1(%arg0: i32) -> (i32, i32, i32) {
    %c0_i32 = arith.constant 0 : i32
    %c0_i32_0 = arith.constant 0 : i32
    %c0_i32_1 = arith.constant 0 : i32
    return %arg0, %c0_i32, %c0_i32_0 : i32, i32, i32
  }
  func.func @transform_2(%arg0: i32) -> (i32, i32, i32) {
    %c0_i32 = arith.constant 0 : i32
    %c0_i32_0 = arith.constant 0 : i32
    %c0_i32_1 = arith.constant 0 : i32
    return %arg0, %c0_i32, %c0_i32_0 : i32, i32, i32
  }
}

</mosaic_0001>

<llo_original>
// kernel: tpu_custom_call.1
$region0: #{tpu_custom_call.1}
  #allocation0 [shape = 'u32[]', space=smem, size = 0x4, offset = 0x4, fixed_abs, tag = 'smem constant byte address 0x4 - core index']
  #allocation1 [shape = 'u32[144,128]{1,0:T(1,128)}', space=vmem, size = 0x12000, scoped, tag = 'internal scratch']
  %s0 = inlined_call_operand.hbm [shape: f32[4,256], index: 0, kind: input, shape index: {}]
  %s1 = inlined_call_operand.hbm [shape: f32[1,8,256], index: 1, kind: input, shape index: {}]
  %s2 = inlined_call_operand.hbm [shape: f32[1,8,256], index: 2, kind: output, shape index: {}]
  %s3 = sld [smem:[#allocation0]]
  $region26: #{tpu_custom_call.1} parent=0
    _
  %s5 = ssub.s32 1, %s3
  %s6 = scalar_select 0, %s5, %s3
  $region1: #{tpu_custom_call.1} parent=0
    #allocation2 [shape = 'u8[4096]{0}', space=vmem, size = 0x1000, scoped, tag = 'input window, operand 0, single buffered']
    #allocation3 [shape = 's32[1]{0}', space=sflag, size = 0x4, scoped, tag = 'scoped memory for tpu_custom_call.1']
    #allocation4 [shape = 's32[1]{0}', space=sflag, size = 0x4, scoped, tag = 'scoped memory for tpu_custom_call.1']
    #allocation5 [shape = 'u8[8192]{0}', space=vmem, size = 0x2000, scoped, tag = 'input window, operand 1, single buffered']
    #allocation6 [shape = 's32[1]{0}', space=sflag, size = 0x4, scoped, tag = 'scoped memory for tpu_custom_call.1']
    #allocation7 [shape = 'u8[8192]{0}', space=vmem, size = 0x2000, scoped, tag = 'output window, operand 0, single buffered']
    %7 = vsyncpa [#allocation3], 0
    %8 = vsyncpa [#allocation6], 0
    %9 = vsyncpa [#allocation4], 0
    // Predicated region
    $region2: #{tpu_custom_call.1} parent=1 // pred_check
      _
    $region3: #{tpu_custom_call.1} parent=1 // pred_check_branch
      %11 = sbr.rel (0) target = $region5
    $region4: #{tpu_custom_call.1} parent=1 // pred_region
      %s13 = ssub.s32 128, 128
      %14 = vsyncadd [#allocation3], %s13
      %s16 = sshll.u32 [#allocation2], 4
      %s17 = int_to_ptr.vmem [resolvable:$true] %s16
      %19 = dma.hbm_to_vmem [thread:$0]  %s0, 128, %s17, [#allocation3]
    $region5: #{tpu_custom_call.1} parent=1 // pred_fallthru
      _
    // Predicated region
    $region6: #{tpu_custom_call.1} parent=1 // pred_check
      _
    $region7: #{tpu_custom_call.1} parent=1 // pred_check_branch
      %21 = sbr.rel (0) target = $region9
    $region8: #{tpu_custom_call.1} parent=1 // pred_region
      %s23 = ssub.s32 256, 256
      %24 = vsyncadd [#allocation6], %s23
      %s26 = sshll.u32 [#allocation5], 4
      %s27 = int_to_ptr.vmem [resolvable:$true] %s26
      %29 = dma.hbm_to_vmem [thread:$0]  %s1, 256, %s27, [#allocation6]
    $region9: #{tpu_custom_call.1} parent=1 // pred_fallthru
      _
    // Predicated region
    $region10: #{tpu_custom_call.1} parent=1 // pred_check
      _
    $region11: #{tpu_custom_call.1} parent=1 // pred_check_branch
      %31 = sbr.rel (0) target = $region13
    $region12: #{tpu_custom_call.1} parent=1 // pred_region
      %32 = dma.done [#allocation3], 128
    $region13: #{tpu_custom_call.1} parent=1 // pred_fallthru
      _
    // Predicated region
    $region14: #{tpu_custom_call.1} parent=1 // pred_check
      _
    $region15: #{tpu_custom_call.1} parent=1 // pred_check_branch
      %34 = sbr.rel (0) target = $region17
    $region16: #{tpu_custom_call.1} parent=1 // pred_region
      %35 = dma.done [#allocation6], 256
    $region17: #{tpu_custom_call.1} parent=1 // pred_fallthru
      _
    %v36 = vld [vmem:[#allocation5] sm:$0xff]
    %v37 = vld [vmem:[#allocation5 + $0x8] sm:$0xff]
    %v38 = vmul.f32 %v36, %v36
    %v39 = vmul.f32 %v37, %v37
    %v40 = vlaneseq
    %v41 = vand.u32 %v40, 127
    %v42 = vadd.s32 %v41, 128
    %v43 = vand.u32 %v41, 1
    %v44 = vand.u32 %v42, 1
    %vm45 = vcmp.eq.s32.totalorder %v43, 0
    %vm46 = vcmp.eq.s32.totalorder %v44, 0
    %47 = vrot.lane.b32.xlu0 %v38, 127
    %v48 = vpop.permute.xlu0 %47
    %49 = vrot.lane.b32.xlu0 %v39, 127
    %v50 = vpop.permute.xlu0 %49
    %vm51 = vcmp.lt.s32.totalorder %v41, 127
    %v52 = vsel %vm51, %v48, %v50
    %v53 = vsel %vm51, %v50, %v48
    %54 = vrot.lane.b32.xlu0 %v38, 1
    %v55 = vpop.permute.xlu0 %54
    %56 = vrot.lane.b32.xlu0 %v39, 1
    %v57 = vpop.permute.xlu0 %56
    %vm58 = vcmp.lt.s32.totalorder %v41, 1
    %v59 = vsel %vm58, %v55, %v57
    %v60 = vsel %vm58, %v57, %v55
    %v61 = vsel %vm45, %v52, %v60
    %v62 = vsel %vm46, %v53, %v59
    %v63 = vadd.f32 %v38, %v61
    %v64 = vadd.f32 %v39, %v62
    %v65 = vmax.f32 %v63, 1e-14
    %v66 = vmax.f32 %v64, 1e-14
    %v67 = vrsqrt.pop %v65
    %v68 = vmul.f32 %v65, %v67
    %vm69 = vcmp.eq.f32.partialorder %v65, inf
    %v70 = vsel %vm69, %v65, %v68
    %vm71 = vcmp.eq.f32.partialorder %v65, 0.0
    %v72 = vand.u32 %v65, 2147483648
    %v73 = vsel %vm71, %v72, %v70
    %v74 = vrsqrt.pop %v66
    %v75 = vmul.f32 %v66, %v74
    %vm76 = vcmp.eq.f32.partialorder %v66, inf
    %v77 = vsel %vm76, %v66, %v75
    %vm78 = vcmp.eq.f32.partialorder %v66, 0.0
    %v79 = vand.u32 %v66, 2147483648
    %v80 = vsel %vm78, %v79, %v77
    %v81 = vmul.f32 %v73, 0.2
    %v82 = vmul.f32 %v80, 0.2
    %v83 = vld [vmem:[#allocation2] ss:$4 sm:$0x3]
    %v85 = vlaneseq
    %v86 = vshrl.u32 %v85, 7
    %v87 = vsub.s32 0, %v86
    %v88 = vrot.slane %v83, %v87
    %v89 = vlaneseq
    %v90 = vshrl.u32 %v89, 7
    %v91 = vsub.s32 1, %v90
    %v92 = vrot.slane %v83, %v91
    %v95 = vadd.f32 %v81, %v88
    %v96 = vadd.f32 %v82, %v92
    %97 = vrot.lane.b32.xlu0 %v95, 32
    %v98 = vpop.permute.xlu0 %97
    %99 = vrot.lane.b32.xlu0 %v96, 32
    %v100 = vpop.permute.xlu0 %99
    %vm101 = vcmp.lt.s32.totalorder %v41, 32
    %v102 = vsel %vm101, %v98, %v100
    %v103 = vsel %vm101, %v100, %v98
    %s104 = scalar_lea.vmem [#allocation2], 1
    %v105 = vld [vmem:[%s104] ss:$4 sm:$0x3]
    %v107 = vlaneseq
    %v108 = vshrl.u32 %v107, 7
    %v109 = vsub.s32 0, %v108
    %v110 = vrot.slane %v105, %v109
    %v111 = vlaneseq
    %v112 = vshrl.u32 %v111, 7
    %v113 = vsub.s32 1, %v112
    %v114 = vrot.slane %v105, %v113
    %v117 = vmul.f32 %v103, %v110
    %v118 = vmul.f32 %v102, %v114
    %v119 = vadd.f32 %v95, %v117
    %v120 = vadd.f32 %v96, %v118
    %121 = vrot.lane.b32.xlu0 %v119, 64
    %v122 = vpop.permute.xlu0 %121
    %123 = vrot.lane.b32.xlu0 %v120, 64
    %v124 = vpop.permute.xlu0 %123
    %vm125 = vcmp.lt.s32.totalorder %v41, 64
    %v126 = vsel %vm125, %v122, %v124
    %v127 = vsel %vm125, %v124, %v122
    %s128 = scalar_lea.vmem [#allocation2], 2
    %v129 = vld [vmem:[%s128] ss:$4 sm:$0x3]
    %v131 = vlaneseq
    %v132 = vshrl.u32 %v131, 7
    %v133 = vsub.s32 0, %v132
    %v134 = vrot.slane %v129, %v133
    %v135 = vlaneseq
    %v136 = vshrl.u32 %v135, 7
    %v137 = vsub.s32 1, %v136
    %v138 = vrot.slane %v129, %v137
    %v141 = vmul.f32 %v127, %v134
    %v142 = vmul.f32 %v126, %v138
    %v143 = vadd.f32 %v119, %v141
    %v144 = vadd.f32 %v120, %v142
    %s145 = scalar_lea.vmem [#allocation2], 3
    %v146 = vld [vmem:[%s145] ss:$4 sm:$0x3]
    %v148 = vlaneseq
    %v149 = vshrl.u32 %v148, 7
    %v150 = vsub.s32 0, %v149
    %v151 = vrot.slane %v146, %v150
    %v152 = vlaneseq
    %v153 = vshrl.u32 %v152, 7
    %v154 = vsub.s32 1, %v153
    %v155 = vrot.slane %v146, %v154
    %v158 = vmul.f32 %v144, %v151
    %v159 = vmul.f32 %v143, %v155
    %v160 = vadd.f32 %v143, %v158
    %v161 = vadd.f32 %v144, %v159
    %v162 = vrsqrt.pop %v160
    %v163 = vrsqrt.pop %v161
    %v164 = vmul.f32 %v36, %v162
    %v165 = vmul.f32 %v37, %v163
    %166 = vst [vmem:[#allocation7] sm:$0xff] %v164
    %167 = vst [vmem:[#allocation7 + $0x8] sm:$0xff] %v165
    // Predicated region
    $region18: #{tpu_custom_call.1} parent=1 // pred_check
      _
    $region19: #{tpu_custom_call.1} parent=1 // pred_check_branch
      %169 = sbr.rel (0) target = $region21
    $region20: #{tpu_custom_call.1} parent=1 // pred_region
      %s171 = ssub.s32 256, 256
      %172 = vsyncadd [#allocation4], %s171
      %s174 = sshll.u32 [#allocation7], 4
      %s175 = int_to_ptr.vmem [resolvable:$true] %s174
      %177 = dma.vmem_to_hbm [thread:$0]  %s175, 256, %s2, [#allocation4]
    $region21: #{tpu_custom_call.1} parent=1 // pred_fallthru
      _
    // Predicated region
    $region22: #{tpu_custom_call.1} parent=1 // pred_check
      _
    $region23: #{tpu_custom_call.1} parent=1 // pred_check_branch
      %179 = sbr.rel (0) target = $region25
    $region24: #{tpu_custom_call.1} parent=1 // pred_region
      %180 = dma.done [#allocation4], 256
    $region25: #{tpu_custom_call.1} parent=1 // pred_fallthru
      _
    %181 = vsyncpa [#allocation3], 1
    %182 = vsyncpa [#allocation6], 1
    %183 = vsyncpa [#allocation4], 1

</llo_original>
